<compile_context>
chip_gen: v6e
topology: v6e:2x2x1
jax: 0.10.0
libtpu: 0.0.40
codegen_flags: <defaults>
</compile_context>

<pallas_src>
import functools

import jax
import jax.numpy as jnp
import numpy as np
from jax.experimental import pallas as pl
from jax.experimental.pallas import tpu as pltpu


def _mlp_base_kernel(x_ref, p_ref, actor_ref, value_ref, *, D, H):
    """Fused actor+critic trunk, actor-only HBM output.

    p_ref layout (rows), lane width = 2H (actor lanes first, critic lanes second):
      [0 : D)            W1  = [Wa1 | Wc1]                 (D, 2H)
      [D : D+2H)         W2  = blockdiag(Wa2, Wc2)         (2H, 2H)
      [D+2H]             b1  = [ba1 | bc1]                 (1, 2H)
      [D+2H+1]           b2  = [ba2 | bc2]                 (1, 2H)
      [D+2H+2]           wv  = [0 | Wv^T]                  (1, 2H)  (actor lanes zero)
      [D+2H+3]           bv  row (bv in col 0)             (1, 2H)
    """
    r = D + 2 * H
    x = x_ref[...]                              # (TB, D)
    w1 = p_ref[0:D, :]                          # (D, 2H)
    w2 = p_ref[D:r, :]                          # (2H, 2H) block-diagonal
    b1 = p_ref[r:r + 1, :]                      # (1, 2H)
    b2 = p_ref[r + 1:r + 2, :]                  # (1, 2H)
    wv = p_ref[r + 2:r + 3, :]                  # (1, 2H), actor half zeroed
    bv = p_ref[r + 3:r + 4, :][:, 0:1]          # (1, 1)

    # Fused layer 1 + 2: one lane-dense 128-wide MXU pass per layer.
    h1 = jnp.tanh(jnp.dot(x, w1, preferred_element_type=jnp.float32) + b1)
    h2 = jnp.tanh(jnp.dot(h1, w2, preferred_element_type=jnp.float32) + b2)

    # Actor-only store (lanes 0..H-1).  Critic half never touches HBM.
    actor_ref[...] = h2[:, :H]

    # Value head: VPU multiply + XLU lane reduction.  wv is zero on the actor
    # lanes, so this equals hidden_critic @ Wv.
    value_ref[...] = jnp.sum(h2 * wv, axis=-1, keepdims=True) + bv


# Batch-tile cap: big enough that DMA time dominates per-step overhead
# (~0.8 MB traffic/step vs ~0.35 us overhead), small enough that rollout
# batches still produce >= 2 grid steps for v7x's two TensorCores, and the
# double-buffered footprint (~6 MB) stays far under scoped VMEM defaults.
_TB_CAP = 2048


def _pick_batch_tile(B):
    """Batch tile: full batch when small, fixed cap (multiple of 8) otherwise.
    With a cdiv grid, Pallas handles the ragged last block."""
    if B <= _TB_CAP:
        return B          # block dim == full array dim is always legal
    return _TB_CAP        # multiple of 8; grid = cdiv(B, TB)


@jax.jit
def mlp_base_forward(x, rnn_hxs, masks, packed_params):
    """Non-recurrent MLPBase forward. Returns (value, hidden_actor, rnn_hxs)."""
    del masks  # only used in the recurrent branch
    B, D = x.shape
    H2 = packed_params.shape[1]
    H = H2 // 2
    P = packed_params.shape[0]                  # D + 2H + 4

    TB = _pick_batch_tile(B)
    grid = (pl.cdiv(B, TB),)

    kernel = functools.partial(_mlp_base_kernel, D=D, H=H)

    hidden_actor, value = pl.pallas_call(
        kernel,
        out_shape=(
            jax.ShapeDtypeStruct((B, H), jnp.float32),   # hidden_actor only
            jax.ShapeDtypeStruct((B, 1), jnp.float32),   # critic value
        ),
        grid=grid,
        in_specs=[
            pl.BlockSpec((TB, D), lambda i: (i, 0)),     # x, tiled over batch
            pl.BlockSpec((P, H2), lambda i: (0, 0)),     # packed params, resident
        ],
        out_specs=(
            pl.BlockSpec((TB, H), lambda i: (i, 0)),
            pl.BlockSpec((TB, 1), lambda i: (i, 0)),
        ),
        compiler_params=pltpu.CompilerParams(
            dimension_semantics=("parallel",)),
    )(x, packed_params)

    return value, hidden_actor, rnn_hxs


def init_params(key, num_inputs, hidden_size):
    """orthogonal(gain=sqrt(2)) weights, zero biases (matches the module's init_)."""
    ortho = jax.nn.initializers.orthogonal(scale=float(np.sqrt(2.0)))
    ks = jax.random.split(key, 5)
    f32 = jnp.float32
    return {
        # critic trunk
        "wc1": ortho(ks[0], (num_inputs, hidden_size), f32),
        "bc1": jnp.zeros((1, hidden_size), f32),
        "wc2": ortho(ks[1], (hidden_size, hidden_size), f32),
        "bc2": jnp.zeros((1, hidden_size), f32),
        # actor trunk
        "wa1": ortho(ks[2], (num_inputs, hidden_size), f32),
        "ba1": jnp.zeros((1, hidden_size), f32),
        "wa2": ortho(ks[3], (hidden_size, hidden_size), f32),
        "ba2": jnp.zeros((1, hidden_size), f32),
        # critic_linear head
        "wv": ortho(ks[4], (hidden_size, 1), f32),
        "bv": jnp.zeros((1, 1), f32),
    }


def pack_params(params):
    """One-time packing of all 10 parameter tensors into a single
    (D + 2H + 4, 2H) f32 array, ACTOR lanes first (so the kernel's actor-only
    store needs no lane rotate).  Done at init, NOT per forward call."""
    D, H = params["wa1"].shape
    f32 = jnp.float32
    zhh = jnp.zeros((H, H), f32)
    w1 = jnp.concatenate([params["wa1"], params["wc1"]], axis=1)            # (D, 2H)
    w2 = jnp.block([[params["wa2"], zhh], [zhh, params["wc2"]]])            # (2H, 2H)
    b1 = jnp.concatenate([params["ba1"], params["bc1"]], axis=1)            # (1, 2H)
    b2 = jnp.concatenate([params["ba2"], params["bc2"]], axis=1)            # (1, 2H)
    wv = jnp.concatenate([jnp.zeros((1, H), f32), params["wv"].T], axis=1)  # (1, 2H)
    bv = jnp.concatenate([params["bv"], jnp.zeros((1, 2 * H - 1), f32)],
                         axis=1)                                            # (1, 2H)
    return jnp.concatenate([w1, w2, b1, b2, wv, bv], axis=0)                # (D+2H+4, 2H)


def _reference_forward(x, params):
    hc = jnp.tanh(x @ params["wc1"] + params["bc1"])
    hc = jnp.tanh(hc @ params["wc2"] + params["bc2"])
    ha = jnp.tanh(x @ params["wa1"] + params["ba1"])
    ha = jnp.tanh(ha @ params["wa2"] + params["ba2"])
    return hc @ params["wv"] + params["bv"], ha


def _check(x, params, packed):
    B = x.shape[0]
    rnn_hxs = jnp.zeros((B, 1), dtype=jnp.float32)   # recurrent_hidden_state_size == 1
    masks = jnp.ones((B, 1), dtype=jnp.float32)
    value, hidden_actor, rnn_hxs_out = mlp_base_forward(x, rnn_hxs, masks, packed)
    jax.block_until_ready((value, hidden_actor, rnn_hxs_out))
    ref_value, ref_actor = _reference_forward(x, params)
    np.testing.assert_allclose(np.asarray(value), np.asarray(ref_value),
                               atol=1e-5, rtol=1e-5)
    np.testing.assert_allclose(np.asarray(hidden_actor), np.asarray(ref_actor),
                               atol=1e-5, rtol=1e-5)
    assert value.shape == (B, 1)
    assert hidden_actor.shape == (B, params["wa1"].shape[1])
    assert rnn_hxs_out.shape == rnn_hxs.shape


# TODO(synk): recurrent=True path (nn.GRU with mask-segmented unrolling) not
# implemented; MLPBase defaults to recurrent=False so forward() never touches
# it here — rnn_hxs is passed through unchanged, matching that branch.

if __name__ == "__main__":
    NUM_INPUTS, HIDDEN = 32, 64

    key = jax.random.PRNGKey(0)
    k_params, k_x_small, k_x_big = jax.random.split(key, 3)

    params = init_params(k_params, NUM_INPUTS, HIDDEN)
    packed = pack_params(params)                       # one-time pack

    # Small demo batch (single grid step).
    x_small = jax.random.normal(k_x_small, (8, NUM_INPUTS), dtype=jnp.float32)
    _check(x_small, params, packed)

    # Larger, non-divisible batch to exercise the cdiv grid / ragged last block.
    x_big = jax.random.normal(k_x_big, (_TB_CAP + 52, NUM_INPUTS), dtype=jnp.float32)
    _check(x_big, params, packed)

    print("KERNEL_OK")
</pallas_src>

<mosaic_0001>
module attributes {stable_mosaic.version = 11 : i64} {
  func.func @_mlp_base_kernel(%arg0: i32, %arg1: memref<8x32xf32, #tpu.memory_space<vmem>>, %arg2: memref<164x128xf32, #tpu.memory_space<vmem>>, %arg3: memref<8x64xf32, #tpu.memory_space<vmem>>, %arg4: memref<8x1xf32, #tpu.memory_space<vmem>>) attributes {dimension_semantics = [#tpu.dimension_semantics<parallel>], iteration_bounds = array<i64: 1>, scalar_prefetch = 0 : i64, scratch_operands = 0 : i64, tpu.core_type = #tpu.core_type<tc>, window_params = [{transform_indices = @transform_0, window_bounds = array<i64: 8, 32>}, {pipeline_mode = #tpu.pipeline_mode<synchronous>, transform_indices = @transform_1, window_bounds = array<i64: 164, 128>}, {transform_indices = @transform_2, window_bounds = array<i64: 8, 64>}, {transform_indices = @transform_3, window_bounds = array<i64: 8, 1>}]} {
    %c0 = arith.constant 0 : index
    %c0_0 = arith.constant 0 : index
    %0 = vector.load %arg1[%c0, %c0_0] : memref<8x32xf32, #tpu.memory_space<vmem>>, vector<8x32xf32>
    %c0_1 = arith.constant 0 : index
    %c0_2 = arith.constant 0 : index
    %1 = vector.load %arg2[%c0_1, %c0_2] : memref<164x128xf32, #tpu.memory_space<vmem>>, vector<32x128xf32>
    %c32 = arith.constant 32 : index
    %c0_3 = arith.constant 0 : index
    %2 = vector.load %arg2[%c32, %c0_3] : memref<164x128xf32, #tpu.memory_space<vmem>>, vector<128x128xf32>
    %c160 = arith.constant 160 : index
    %c0_4 = arith.constant 0 : index
    %3 = vector.load %arg2[%c160, %c0_4] : memref<164x128xf32, #tpu.memory_space<vmem>>, vector<1x128xf32>
    %c161 = arith.constant 161 : index
    %c0_5 = arith.constant 0 : index
    %4 = vector.load %arg2[%c161, %c0_5] : memref<164x128xf32, #tpu.memory_space<vmem>>, vector<1x128xf32>
    %c162 = arith.constant 162 : index
    %c0_6 = arith.constant 0 : index
    %5 = vector.load %arg2[%c162, %c0_6] : memref<164x128xf32, #tpu.memory_space<vmem>>, vector<1x128xf32>
    %c163 = arith.constant 163 : index
    %c0_7 = arith.constant 0 : index
    %6 = vector.load %arg2[%c163, %c0_7] : memref<164x128xf32, #tpu.memory_space<vmem>>, vector<1x128xf32>
    %7 = vector.extract_strided_slice %6 {offsets = [0, 0], sizes = [1, 1], strides = [1, 1]} : vector<1x128xf32> to vector<1x1xf32>
    %cst = arith.constant dense<0.000000e+00> : vector<8x128xf32>
    %8 = tpu.matmul %0, %1, %cst {dimension_numbers = #tpu.dot_dimension_numbers<[1], [0], [0], [1], [0, 0, 1, 1], [], []>} : vector<8x32xf32>, vector<32x128xf32>, vector<8x128xf32> -> vector<8x128xf32>
    %9 = vector.broadcast %3 : vector<1x128xf32> to vector<8x128xf32>
    %10 = arith.addf %8, %9 : vector<8x128xf32>
    %11 = math.tanh %10 : vector<8x128xf32>
    %cst_8 = arith.constant dense<0.000000e+00> : vector<8x128xf32>
    %12 = tpu.matmul %11, %2, %cst_8 {dimension_numbers = #tpu.dot_dimension_numbers<[1], [0], [0], [1], [0, 0, 1, 1], [], []>} : vector<8x128xf32>, vector<128x128xf32>, vector<8x128xf32> -> vector<8x128xf32>
    %13 = vector.broadcast %4 : vector<1x128xf32> to vector<8x128xf32>
    %14 = arith.addf %12, %13 : vector<8x128xf32>
    %15 = math.tanh %14 : vector<8x128xf32>
    %16 = vector.extract_strided_slice %15 {offsets = [0, 0], sizes = [8, 64], strides = [1, 1]} : vector<8x128xf32> to vector<8x64xf32>
    %c0_9 = arith.constant 0 : index
    %c0_10 = arith.constant 0 : index
    %17 = vector.load %arg3[%c0_9, %c0_10] : memref<8x64xf32, #tpu.memory_space<vmem>>, vector<8x64xf32>
    tpu.vector_store %arg3[%c0_9, %c0_10], %16 {strides = array<i32>} : memref<8x64xf32, #tpu.memory_space<vmem>>, vector<8x64xf32>,
    %18 = vector.broadcast %5 : vector<1x128xf32> to vector<8x128xf32>
    %19 = arith.mulf %15, %18 : vector<8x128xf32>
    %cst_11 = arith.constant dense<0.000000e+00> : vector<8xf32>
    %20 = vector.multi_reduction <add>, %19, %cst_11 [1] : vector<8x128xf32> to vector<8xf32>
    %21 = vector.shape_cast %20 : vector<8xf32> to vector<8x1xf32>
    %22 = vector.broadcast %7 : vector<1x1xf32> to vector<8x1xf32>
    %23 = arith.addf %21, %22 : vector<8x1xf32>
    %c0_12 = arith.constant 0 : index
    %c0_13 = arith.constant 0 : index
    %24 = vector.load %arg4[%c0_12, %c0_13] : memref<8x1xf32, #tpu.memory_space<vmem>>, vector<8x1xf32>
    tpu.vector_store %arg4[%c0_12, %c0_13], %23 {strides = array<i32>} : memref<8x1xf32, #tpu.memory_space<vmem>>, vector<8x1xf32>,
    return
  }
  func.func @transform_0(%arg0: i32) -> (i32, i32) {
    %c0_i32 = arith.constant 0 : i32
    %c0_i32_0 = arith.constant 0 : i32
    return %arg0, %c0_i32 : i32, i32
  }
  func.func @transform_1(%arg0: i32) -> (i32, i32) {
    %c0_i32 = arith.constant 0 : i32
    %c0_i32_0 = arith.constant 0 : i32
    %c0_i32_1 = arith.constant 0 : i32
    return %c0_i32, %c0_i32_0 : i32, i32
  }
  func.func @transform_2(%arg0: i32) -> (i32, i32) {
    %c0_i32 = arith.constant 0 : i32
    %c0_i32_0 = arith.constant 0 : i32
    return %arg0, %c0_i32 : i32, i32
  }
  func.func @transform_3(%arg0: i32) -> (i32, i32) {
    %c0_i32 = arith.constant 0 : i32
    %c0_i32_0 = arith.constant 0 : i32
    return %arg0, %c0_i32 : i32, i32
  }
}

</mosaic_0001>

<llo_original>
// kernel: mlp_base_forward.1
$region0: #{mlp_base_forward.1}
  #allocation0 [shape = 'u32[]', space=smem, size = 0x4, offset = 0x4, fixed_abs, tag = 'smem constant byte address 0x4 - core index']
  #allocation1 [shape = 'u32[144,128]{1,0:T(1,128)}', space=vmem, size = 0x12000, scoped, tag = 'internal scratch']
  %s0 = inlined_call_operand.hbm [shape: f32[8,32], index: 0, kind: input, shape index: {}]
  %s1 = inlined_call_operand.hbm [shape: f32[164,128], index: 1, kind: input, shape index: {}]
  %s2 = inlined_call_operand.hbm [shape: f32[8,64], index: 2, kind: output, shape index: {0}]
  %s3 = inlined_call_operand.vmem [shape: f32[8,1], index: 3, kind: output, shape index: {1}]
  %4 = xla_tuple %s2, %s3
  %s5 = sld [smem:[#allocation0]]
  $region34: #{mlp_base_forward.1} parent=0
    _
  %s7 = ssub.s32 1, %s5
  %s8 = scalar_select 0, %s7, %s5
  $region1: #{mlp_base_forward.1} parent=0
    #allocation2 [shape = 'u8[4096]{0}', space=vmem, size = 0x1000, scoped, tag = 'input window, operand 0, single buffered']
    #allocation3 [shape = 's32[1]{0}', space=sflag, size = 0x4, scoped, tag = 'scoped memory for mlp_base_forward.1']
    #allocation4 [shape = 's32[1]{0}', space=sflag, size = 0x4, scoped, tag = 'scoped memory for mlp_base_forward.1']
    #allocation5 [shape = 'u8[86016]{0}', space=vmem, size = 0x15000, scoped, tag = 'input window, operand 1, single buffered']
    #allocation6 [shape = 's32[1]{0}', space=sflag, size = 0x4, scoped, tag = 'scoped memory for mlp_base_forward.1']
    #allocation7 [shape = 'u8[4096]{0}', space=vmem, size = 0x1000, scoped, tag = 'output window, operand 0, single buffered']
    %9 = vsyncpa [#allocation3], 0
    %10 = vsyncpa [#allocation6], 0
    %11 = vsyncpa [#allocation4], 0
    // Predicated region
    $region2: #{mlp_base_forward.1} parent=1 // pred_check
      _
    $region3: #{mlp_base_forward.1} parent=1 // pred_check_branch
      %13 = sbr.rel (0) target = $region5
    $region4: #{mlp_base_forward.1} parent=1 // pred_region
      %s15 = ssub.s32 128, 128
      %16 = vsyncadd [#allocation3], %s15
      %s18 = sshll.u32 [#allocation2], 4
      %s19 = int_to_ptr.vmem [resolvable:$true] %s18
      %21 = dma.hbm_to_vmem [thread:$0]  %s0, 128, %s19, [#allocation3]
    $region5: #{mlp_base_forward.1} parent=1 // pred_fallthru
      _
    // Predicated region
    $region6: #{mlp_base_forward.1} parent=1 // pred_check
      _
    $region7: #{mlp_base_forward.1} parent=1 // pred_check_branch
      %23 = sbr.rel (0) target = $region9
    $region8: #{mlp_base_forward.1} parent=1 // pred_region
      %s25 = ssub.s32 2688, 2688
      %26 = vsyncadd [#allocation6], %s25
      %s27 = sshll.u32 [#allocation5], 4
      %s28 = int_to_ptr.vmem [resolvable:$true] %s27
      %33 = dma.hbm_to_vmem [thread:$0]  %s1, 2688, %s28, [#allocation6], 128, 128, 8
    $region9: #{mlp_base_forward.1} parent=1 // pred_fallthru
      _
    // Predicated region
    $region10: #{mlp_base_forward.1} parent=1 // pred_check
      _
    $region11: #{mlp_base_forward.1} parent=1 // pred_check_branch
      %35 = sbr.rel (0) target = $region13
    $region12: #{mlp_base_forward.1} parent=1 // pred_region
      %36 = dma.done [#allocation3], 128
    $region13: #{mlp_base_forward.1} parent=1 // pred_fallthru
      _
    // Predicated region
    $region14: #{mlp_base_forward.1} parent=1 // pred_check
      _
    $region15: #{mlp_base_forward.1} parent=1 // pred_check_branch
      %38 = sbr.rel (0) target = $region17
    $region16: #{mlp_base_forward.1} parent=1 // pred_region
      %39 = dma.done [#allocation6], 2688
    $region17: #{mlp_base_forward.1} parent=1 // pred_fallthru
      _
    %v40 = vld [vmem:[#allocation2] sm:$0xff]
    %v41 = vld [vmem:[#allocation5] sm:$0xff]
    %v42 = vld [vmem:[#allocation5 + $0x8] sm:$0xff]
    %v43 = vld [vmem:[#allocation5 + $0x10] sm:$0xff]
    %v44 = vld [vmem:[#allocation5 + $0x18] sm:$0xff]
    %v45 = vld [vmem:[#allocation5 + $0x20] sm:$0xff]
    %v46 = vld [vmem:[#allocation5 + $0x28] sm:$0xff]
    %v47 = vld [vmem:[#allocation5 + $0x30] sm:$0xff]
    %v48 = vld [vmem:[#allocation5 + $0x38] sm:$0xff]
    %v49 = vld [vmem:[#allocation5 + $0x40] sm:$0xff]
    %v50 = vld [vmem:[#allocation5 + $0x48] sm:$0xff]
    %v51 = vld [vmem:[#allocation5 + $0x50] sm:$0xff]
    %v52 = vld [vmem:[#allocation5 + $0x58] sm:$0xff]
    %v53 = vld [vmem:[#allocation5 + $0x60] sm:$0xff]
    %v54 = vld [vmem:[#allocation5 + $0x68] sm:$0xff]
    %v55 = vld [vmem:[#allocation5 + $0x70] sm:$0xff]
    %v56 = vld [vmem:[#allocation5 + $0x78] sm:$0xff]
    %v57 = vld [vmem:[#allocation5 + $0x80] sm:$0xff]
    %v58 = vld [vmem:[#allocation5 + $0x88] sm:$0xff]
    %v59 = vld [vmem:[#allocation5 + $0x90] sm:$0xff]
    %v60 = vld [vmem:[#allocation5 + $0x98] sm:$0xff]
    %v61 = vld [vmem:[#allocation5 + $0xa0] sm:$0x1]
    %v62 = vld [vmem:[#allocation5 + $0xa1] sm:$0x1]
    %v63 = vld [vmem:[#allocation5 + $0xa2] sm:$0x1]
    %v64 = vld [vmem:[#allocation5 + $0xa3] sm:$0x1]
    %v65 = vlaneseq
    %v66 = vshrl.u32 %v65, 7
    %v67 = vsub.s32 0, %v66
    %v68 = vrot.slane %v61, %v67
    %vm69 = vcmask 261120
    %v71 = vsel %vm69, %v40, 0
    %73 = vmatprep.subr.mxu0 0.0
    %74 = vmatpush1.msra.mxu0 0.0
    %75 = vmatprep.subr.mxu0 0.0
    %76 = vmatpush1.msra.mxu0 0.0
    %77 = vmatprep.subr.mxu0 0.0
    %78 = vmatpush1.msra.mxu0 0.0
    %79 = vmatprep.subr.mxu0 0.0
    %80 = vmatpush1.msra.mxu0 0.0
    %81 = vmatprep.subr.mxu0 0.0
    %82 = vmatpush1.msra.mxu0 0.0
    %83 = vmatprep.subr.mxu0 0.0
    %84 = vmatpush1.msra.mxu0 0.0
    %85 = vmatprep.subr.mxu0 0.0
    %86 = vmatpush1.msra.mxu0 0.0
    %87 = vmatprep.subr.mxu0 0.0
    %88 = vmatpush1.msra.mxu0 0.0
    %89 = vmatprep.subr.mxu0 0.0
    %90 = vmatpush1.msra.mxu0 0.0
    %91 = vmatprep.subr.mxu0 0.0
    %92 = vmatpush1.msra.mxu0 0.0
    %93 = vmatprep.subr.mxu0 0.0
    %94 = vmatpush1.msra.mxu0 0.0
    %95 = vmatprep.subr.mxu0 0.0
    %96 = vmatpush1.msra.mxu0 0.0
    %97 = vmatprep.subr.mxu0 0.0
    %98 = vmatpush1.msra.mxu0 %v44
    %99 = vmatprep.subr.mxu0 0.0
    %100 = vmatpush1.msra.mxu0 %v43
    %101 = vmatprep.subr.mxu0 0.0
    %102 = vmatpush1.msra.mxu0 %v42
    %103 = vmatprep.subr.mxu0 0.0
    %104 = vmatpush1.msra.mxu0 %v41
    %105 = vmatprep.subr.mxu0 0.0
    %106 = vmatpush2.msra.mxu0 0.0
    %107 = vmatprep.subr.mxu0 0.0
    %108 = vmatpush2.msra.mxu0 0.0
    %109 = vmatprep.subr.mxu0 0.0
    %110 = vmatpush2.msra.mxu0 0.0
    %111 = vmatprep.subr.mxu0 0.0
    %112 = vmatpush2.msra.mxu0 0.0
    %113 = vmatprep.subr.mxu0 0.0
    %114 = vmatpush2.msra.mxu0 0.0
    %115 = vmatprep.subr.mxu0 0.0
    %116 = vmatpush2.msra.mxu0 0.0
    %117 = vmatprep.subr.mxu0 0.0
    %118 = vmatpush2.msra.mxu0 0.0
    %119 = vmatprep.subr.mxu0 0.0
    %120 = vmatpush2.msra.mxu0 0.0
    %121 = vmatprep.subr.mxu0 0.0
    %122 = vmatpush2.msra.mxu0 0.0
    %123 = vmatprep.subr.mxu0 0.0
    %124 = vmatpush2.msra.mxu0 0.0
    %125 = vmatprep.subr.mxu0 0.0
    %126 = vmatpush2.msra.mxu0 0.0
    %127 = vmatprep.subr.mxu0 0.0
    %128 = vmatpush2.msra.mxu0 0.0
    %129 = vmatprep.subr.mxu0 0.0
    %130 = vmatpush2.msra.mxu0 0.0
    %131 = vmatprep.subr.mxu0 0.0
    %132 = vmatpush2.msra.mxu0 0.0
    %133 = vmatprep.subr.mxu0 0.0
    %134 = vmatpush2.msra.mxu0 0.0
    %135 = vmatprep.subr.mxu0 0.0
    %136 = vmatpush2.msra.mxu0 0.0
    %137 = vmatprep.mubr.f32.mxu0 0.0
    %138 = vmatmul.mubr.f32.gmra.mxu0 %v71
    %v139 = vpop.f32.mrf.mxu0
    %v140 = vadd.f32 %v68, %v139
    %v141 = vpop.f32.mrf.mxu0
    %142 = vdwg.mxu0
    %v143 = vtanh.pop %v140
    %v144 = vlaneseq
    %v145 = vshrl.u32 %v144, 7
    %v146 = vsub.s32 0, %v145
    %v147 = vrot.slane %v62, %v146
    %148 = vmatprep.subr.mxu0 0.0
    %149 = vmatpush1.msra.mxu0 %v60
    %150 = vmatprep.subr.mxu0 0.0
    %151 = vmatpush1.msra.mxu0 %v59
    %152 = vmatprep.subr.mxu0 0.0
    %153 = vmatpush1.msra.mxu0 %v58
    %154 = vmatprep.subr.mxu0 0.0
    %155 = vmatpush1.msra.mxu0 %v57
    %156 = vmatprep.subr.mxu0 0.0
    %157 = vmatpush1.msra.mxu0 %v56
    %158 = vmatprep.subr.mxu0 0.0
    %159 = vmatpush1.msra.mxu0 %v55
    %160 = vmatprep.subr.mxu0 0.0
    %161 = vmatpush1.msra.mxu0 %v54
    %162 = vmatprep.subr.mxu0 0.0
    %163 = vmatpush1.msra.mxu0 %v53
    %164 = vmatprep.subr.mxu0 0.0
    %165 = vmatpush1.msra.mxu0 %v52
    %166 = vmatprep.subr.mxu0 0.0
    %167 = vmatpush1.msra.mxu0 %v51
    %168 = vmatprep.subr.mxu0 0.0
    %169 = vmatpush1.msra.mxu0 %v50
    %170 = vmatprep.subr.mxu0 0.0
    %171 = vmatpush1.msra.mxu0 %v49
    %172 = vmatprep.subr.mxu0 0.0
    %173 = vmatpush1.msra.mxu0 %v48
    %174 = vmatprep.subr.mxu0 0.0
    %175 = vmatpush1.msra.mxu0 %v47
    %176 = vmatprep.subr.mxu0 0.0
    %177 = vmatpush1.msra.mxu0 %v46
    %178 = vmatprep.subr.mxu0 0.0
    %179 = vmatpush1.msra.mxu0 %v45
    %180 = vmatprep.subr.mxu0 0.0
    %181 = vmatpush2.msra.mxu0 0.0
    %182 = vmatprep.subr.mxu0 0.0
    %183 = vmatpush2.msra.mxu0 0.0
    %184 = vmatprep.subr.mxu0 0.0
    %185 = vmatpush2.msra.mxu0 0.0
    %186 = vmatprep.subr.mxu0 0.0
    %187 = vmatpush2.msra.mxu0 0.0
    %188 = vmatprep.subr.mxu0 0.0
    %189 = vmatpush2.msra.mxu0 0.0
    %190 = vmatprep.subr.mxu0 0.0
    %191 = vmatpush2.msra.mxu0 0.0
    %192 = vmatprep.subr.mxu0 0.0
    %193 = vmatpush2.msra.mxu0 0.0
    %194 = vmatprep.subr.mxu0 0.0
    %195 = vmatpush2.msra.mxu0 0.0
    %196 = vmatprep.subr.mxu0 0.0
    %197 = vmatpush2.msra.mxu0 0.0
    %198 = vmatprep.subr.mxu0 0.0
    %199 = vmatpush2.msra.mxu0 0.0
    %200 = vmatprep.subr.mxu0 0.0
    %201 = vmatpush2.msra.mxu0 0.0
    %202 = vmatprep.subr.mxu0 0.0
    %203 = vmatpush2.msra.mxu0 0.0
    %204 = vmatprep.subr.mxu0 0.0
    %205 = vmatpush2.msra.mxu0 0.0
    %206 = vmatprep.subr.mxu0 0.0
    %207 = vmatpush2.msra.mxu0 0.0
    %208 = vmatprep.subr.mxu0 0.0
    %209 = vmatpush2.msra.mxu0 0.0
    %210 = vmatprep.subr.mxu0 0.0
    %211 = vmatpush2.msra.mxu0 0.0
    %212 = vmatprep.mubr.f32.mxu0 0.0
    %213 = vmatmul.mubr.f32.gmra.mxu0 %v143
    %v214 = vpop.f32.mrf.mxu0
    %v215 = vadd.f32 %v147, %v214
    %v216 = vpop.f32.mrf.mxu0
    %217 = vdwg.mxu0
    %v218 = vtanh.pop %v215
    %vm219 = vcmask 523264
    %220 = vst.msk [vmem:[#allocation7] sm:$0xff] %vm219, %v218
    %v221 = vlaneseq
    %v222 = vshrl.u32 %v221, 7
    %v223 = vsub.s32 0, %v222
    %v224 = vrot.slane %v63, %v223
    %v225 = vmul.f32 %v218, %v224
    %226 = vadd.xlane.f32.xlu0 %v225
    %v227 = vpop.xlane.xlu0 %226
    %v228 = vlaneseq
    %v229 = vshrl.u32 %v228, 7
    %v230 = vsub.s32 0, %v229
    %v231 = vrot.slane %v64, %v230
    %v232 = vadd.f32 %v227, %v231
    %vm233 = vcmask 7168
    %234 = vst.msk [vmem:[%s3] sm:$0xff] %vm233, %v232
    // Predicated region
    $region18: #{mlp_base_forward.1} parent=1 // pred_check
      _
    $region19: #{mlp_base_forward.1} parent=1 // pred_check_branch
      %236 = sbr.rel (0) target = $region21
    $region20: #{mlp_base_forward.1} parent=1 // pred_region
      %s238 = ssub.s32 128, 128
      %239 = vsyncadd [#allocation4], %s238
      %s241 = sshll.u32 [#allocation7], 4
      %s242 = int_to_ptr.vmem [resolvable:$true] %s241
      %244 = dma.vmem_to_hbm [thread:$0]  %s242, 128, %s2, [#allocation4]
    $region21: #{mlp_base_forward.1} parent=1 // pred_fallthru
      _
    // Predicated region
    $region22: #{mlp_base_forward.1} parent=1 // pred_check
      _
    $region23: #{mlp_base_forward.1} parent=1 // pred_check_branch
      %246 = sbr.rel (0) target = $region25
    $region24: #{mlp_base_forward.1} parent=1 // pred_region
      _
    $region25: #{mlp_base_forward.1} parent=1 // pred_fallthru
      _
    // Predicated region
    $region26: #{mlp_base_forward.1} parent=1 // pred_check
      _
    $region27: #{mlp_base_forward.1} parent=1 // pred_check_branch
      %248 = sbr.rel (0) target = $region29
    $region28: #{mlp_base_forward.1} parent=1 // pred_region
      %249 = dma.done [#allocation4], 128
    $region29: #{mlp_base_forward.1} parent=1 // pred_fallthru
      _
    // Predicated region
    $region30: #{mlp_base_forward.1} parent=1 // pred_check
      _
    $region31: #{mlp_base_forward.1} parent=1 // pred_check_branch
      %251 = sbr.rel (0) target = $region33
    $region32: #{mlp_base_forward.1} parent=1 // pred_region
      _
    $region33: #{mlp_base_forward.1} parent=1 // pred_fallthru
      _
    %252 = vsyncpa [#allocation3], 1
    %253 = vsyncpa [#allocation6], 1
    %254 = vsyncpa [#allocation4], 1

</llo_original>
